<compile_context>
chip_gen: v6e
topology: v6e:2x2x1
jax: 0.10.0
libtpu: 0.0.40
codegen_flags: <defaults>
</compile_context>

<pallas_src>
import jax
import jax.numpy as jnp
from jax.experimental import pallas as pl
from jax.experimental.pallas import tpu as pltpu


# ----------------------------- local mode kernel -----------------------------
def _local_kernel(x_ref, w_ref, b_ref, o_ref):
    # x_ref: (B, K, N) VMEM   w_ref: (1, K) VMEM   b_ref: (1, 1) SMEM
    # o_ref: (B, N)
    w = w_ref[...]                                   # (1, K)
    bias = b_ref[0, 0]                               # scalar from SMEM
    B = o_ref.shape[0]
    rows = [
        jnp.dot(w, x_ref[b], preferred_element_type=jnp.float32)   # (1, N)
        for b in range(B)                            # B is static; unrolled
    ]
    y = jnp.concatenate(rows, axis=0) + bias         # (B, N), single store below
    o_ref[...] = jax.nn.sigmoid(y)


# ----------------------------- global mode kernel ----------------------------
def _global_kernel(x_ref, w1_ref, b1_ref, w2_ref, b2_ref, w3_ref, b3_ref, o_ref):
    # x_ref: (1, K, TILE_N)  weights: (K,64),(1,64),(64,32),(1,32),(32,C),(1,C)
    # o_ref: (1, TILE_N, classes)
    x = x_ref[0]                                     # (K, TILE_N)

    # fc1: contract over K (transposed-LHS matmul on the MXU) -> (TILE_N, 64).
    # This fuses away the wrapper permute/reshape HBM pass.
    h = jax.lax.dot_general(
        x, w1_ref[...],
        dimension_numbers=(((0,), (0,)), ((), ())),
        preferred_element_type=jnp.float32)
    h = jnp.maximum(h + b1_ref[...], 0.0)            # ReLU

    # fc2 with BN1 (eval-mode) folded into w2/b2 ahead of time.
    h = jnp.maximum(
        jnp.dot(h, w2_ref[...], preferred_element_type=jnp.float32) + b2_ref[...],
        0.0)

    # fc3 with BN2 folded into w3/b3.
    h = jnp.maximum(
        jnp.dot(h, w3_ref[...], preferred_element_type=jnp.float32) + b3_ref[...],
        0.0)

    # Row-wise softmax (== Softmax(dim=2) after the (B, N, classes) reshape).
    m = jnp.max(h, axis=-1, keepdims=True)
    e = jnp.exp(h - m)
    inv = pl.reciprocal(jnp.sum(e, axis=-1, keepdims=True), approx=True)  # EUP slot
    o_ref[0] = e * inv


def _pick_tile_n(n):
    # Largest lane-aligned tile that divides N; fall back to the full axis.
    for t in (512, 256, 128):
        if n % t == 0:
            return t
    return n


# --------------------------------- wrapper -----------------------------------
class OutputLayerPallas:
    def __init__(self, x_shape, mode='local', classes=10, key=None):
        if key is None:
            key = jax.random.PRNGKey(0)
        self.batch_size, self.in_feature, self.T_slot, self.n_node = x_shape
        self.classes = classes
        K = self.in_feature * self.T_slot
        eps = 1e-5

        if mode == 'local':
            self.mode = 0
            k1, k2 = jax.random.split(key)
            # Conv2d(C, 1, kernel=[T,1]) weight flattened over (C, T) -> (1, C*T)
            self.w = jax.random.normal(k1, (1, K), jnp.float32) * 0.1
            self.b = jax.random.normal(k2, (1, 1), jnp.float32) * 0.1
        elif mode == 'global':
            self.mode = 1
            ks = jax.random.split(key, 14)
            # Raw (torch-equivalent) parameters -- kept for the reference path.
            self.w1 = jax.random.normal(ks[0], (K, 64), jnp.float32) / jnp.sqrt(K).astype(jnp.float32)
            self.b1 = jax.random.normal(ks[1], (1, 64), jnp.float32) * 0.1
            self.g1 = 1.0 + 0.1 * jax.random.normal(ks[2], (1, 64), jnp.float32)
            self.bt1 = 0.1 * jax.random.normal(ks[3], (1, 64), jnp.float32)
            self.rm1 = 0.1 * jax.random.normal(ks[4], (1, 64), jnp.float32)
            self.rv1 = 1.0 + 0.5 * jax.random.uniform(ks[5], (1, 64), jnp.float32)
            self.w2 = jax.random.normal(ks[6], (64, 32), jnp.float32) / 8.0
            self.b2 = jax.random.normal(ks[7], (1, 32), jnp.float32) * 0.1
            self.g2 = 1.0 + 0.1 * jax.random.normal(ks[8], (1, 32), jnp.float32)
            self.bt2 = 0.1 * jax.random.normal(ks[9], (1, 32), jnp.float32)
            self.rm2 = 0.1 * jax.random.normal(ks[10], (1, 32), jnp.float32)
            self.rv2 = 1.0 + 0.5 * jax.random.uniform(ks[11], (1, 32), jnp.float32)
            self.w3 = jax.random.normal(ks[12], (32, classes), jnp.float32) / jnp.sqrt(32.0)
            self.b3 = jax.random.normal(ks[13], (1, classes), jnp.float32) * 0.1

            # ---- Exact affine fold of eval-mode BatchNorm into the next Linear ----
            s1 = self.g1 * jax.lax.rsqrt(self.rv1 + eps)          # (1, 64)
            t1 = self.bt1 - self.rm1 * s1                          # (1, 64)
            self.w2f = self.w2 * s1.reshape(-1, 1)                 # (64, 32)
            self.b2f = t1 @ self.w2 + self.b2                      # (1, 32)

            s2 = self.g2 * jax.lax.rsqrt(self.rv2 + eps)           # (1, 32)
            t2 = self.bt2 - self.rm2 * s2                          # (1, 32)
            self.w3f = self.w3 * s2.reshape(-1, 1)                 # (32, classes)
            self.b3f = t2 @ self.w3 + self.b3                      # (1, classes)
        else:
            raise ValueError(mode)

    # -------- local: one ungridded call over all B batches --------
    def _local_forward(self, x):
        B, C, T, N = x.shape
        K = C * T
        xr = x.reshape(B, K, N)                      # free contiguous reshape
        out = pl.pallas_call(
            _local_kernel,
            out_shape=jax.ShapeDtypeStruct((B, N), jnp.float32),
            in_specs=[
                pl.BlockSpec(memory_space=pltpu.MemorySpace.VMEM),   # x
                pl.BlockSpec(memory_space=pltpu.MemorySpace.VMEM),   # w
                pl.BlockSpec(memory_space=pltpu.MemorySpace.SMEM),   # scalar bias
            ],
            out_specs=pl.BlockSpec(memory_space=pltpu.MemorySpace.VMEM),
        )(xr, self.w, self.b)
        return out

    # -------- global: gridded over (batch, node-tiles), weights resident --------
    def _global_forward(self, x):
        B, C, T, N = x.shape
        K = C * T
        xr = x.reshape(B, K, N)                      # no HBM permute; contraction
        tile_n = _pick_tile_n(N)                     # over K happens in-kernel
        n_tiles = N // tile_n
        cls = self.classes
        # TODO(synk): for very large K / hidden dims, cast activations+weights to
        # bf16 for the MXU (keep f32 accumulation) and raise vmem_limit_bytes.
        out = pl.pallas_call(
            _global_kernel,
            out_shape=jax.ShapeDtypeStruct((B, N, cls), jnp.float32),
            grid=(B, n_tiles),
            in_specs=[
                pl.BlockSpec((1, K, tile_n), lambda b, n: (b, 0, n)),   # x tile
                pl.BlockSpec((K, 64), lambda b, n: (0, 0)),             # w1 (resident)
                pl.BlockSpec((1, 64), lambda b, n: (0, 0)),             # b1
                pl.BlockSpec((64, 32), lambda b, n: (0, 0)),            # w2 (BN1 folded)
                pl.BlockSpec((1, 32), lambda b, n: (0, 0)),             # b2 (BN1 folded)
                pl.BlockSpec((32, cls), lambda b, n: (0, 0)),           # w3 (BN2 folded)
                pl.BlockSpec((1, cls), lambda b, n: (0, 0)),            # b3 (BN2 folded)
            ],
            out_specs=pl.BlockSpec((1, tile_n, cls), lambda b, n: (b, n, 0)),
            compiler_params=pltpu.CompilerParams(
                dimension_semantics=("parallel", "parallel")),
        )(xr, self.w1, self.b1, self.w2f, self.b2f, self.w3f, self.b3f)
        return out

    def __call__(self, x):
        return self._local_forward(x) if self.mode == 0 else self._global_forward(x)


# ----------------------------- pure-JAX references ---------------------------
def _ref_local(layer, x):
    B, C, T, N = x.shape
    y = jnp.einsum('bkn,ok->bn', x.reshape(B, C * T, N), layer.w) + layer.b[0, 0]
    return jax.nn.sigmoid(y)


def _ref_global(layer, x):
    # Uses the RAW (unfolded) parameters and the original permute/reshape path,
    # so it also validates the BN fold and the in-kernel transpose fusion.
    B, C, T, N = x.shape
    h = jnp.transpose(x, (0, 3, 1, 2)).reshape(B * N, C * T)
    eps = 1e-5
    h = jnp.maximum(h @ layer.w1 + layer.b1, 0.0)
    h = layer.g1 * (h - layer.rm1) / jnp.sqrt(layer.rv1 + eps) + layer.bt1
    h = jnp.maximum(h @ layer.w2 + layer.b2, 0.0)
    h = layer.g2 * (h - layer.rm2) / jnp.sqrt(layer.rv2 + eps) + layer.bt2
    h = jnp.maximum(h @ layer.w3 + layer.b3, 0.0)
    return jax.nn.softmax(h, axis=-1).reshape(B, N, layer.classes)


if __name__ == "__main__":
    key = jax.random.PRNGKey(0)
    kx, kp_local, kp_global = jax.random.split(key, 3)

    # x_shape = [batch, in_feature, T_slot, n_node]
    x_shape = (2, 4, 8, 16)
    x = jax.random.normal(kx, x_shape, jnp.float32)

    # local mode
    layer_l = OutputLayerPallas(list(x_shape), mode='local', classes=10, key=kp_local)
    out_l = jax.block_until_ready(layer_l(x))
    assert out_l.shape == (x_shape[0], x_shape[3])
    assert jnp.allclose(out_l, _ref_local(layer_l, x), atol=5e-3, rtol=5e-3)

    # global mode
    layer_g = OutputLayerPallas(list(x_shape), mode='global', classes=10, key=kp_global)
    out_g = jax.block_until_ready(layer_g(x))
    assert out_g.shape == (x_shape[0], x_shape[3], 10)
    assert jnp.allclose(out_g, _ref_global(layer_g, x), atol=5e-3, rtol=5e-3)

    print("KERNEL_OK")
</pallas_src>

<mosaic_0001>
module attributes {stable_mosaic.version = 11 : i64} {
  func.func @_local_kernel(%arg0: memref<2x32x16xf32, #tpu.memory_space<vmem>>, %arg1: memref<1x32xf32, #tpu.memory_space<vmem>>, %arg2: memref<1x1xf32, #tpu.memory_space<smem>>, %arg3: memref<2x16xf32, #tpu.memory_space<vmem>>) attributes {dimension_semantics = [], scalar_prefetch = 0 : i64, scratch_operands = 0 : i64, tpu.core_type = #tpu.core_type<tc>} {
    %c0 = arith.constant 0 : index
    %c0_0 = arith.constant 0 : index
    %0 = vector.load %arg1[%c0, %c0_0] : memref<1x32xf32, #tpu.memory_space<vmem>>, vector<1x32xf32>
    %c0_1 = arith.constant 0 : index
    %c0_2 = arith.constant 0 : index
    %1 = memref.load %arg2[%c0_1, %c0_2] : memref<1x1xf32, #tpu.memory_space<smem>>
    %c0_3 = arith.constant 0 : index
    %c0_4 = arith.constant 0 : index
    %c0_5 = arith.constant 0 : index
    %2 = vector.load %arg0[%c0_3, %c0_4, %c0_5] : memref<2x32x16xf32, #tpu.memory_space<vmem>>, vector<1x32x16xf32>
    %3 = vector.shape_cast %2 : vector<1x32x16xf32> to vector<32x16xf32>
    %cst = arith.constant dense<0.000000e+00> : vector<1x16xf32>
    %4 = tpu.matmul %0, %3, %cst {dimension_numbers = #tpu.dot_dimension_numbers<[1], [0], [0], [1], [0, 0, 1, 1], [], []>} : vector<1x32xf32>, vector<32x16xf32>, vector<1x16xf32> -> vector<1x16xf32>
    %c1 = arith.constant 1 : index
    %c0_6 = arith.constant 0 : index
    %c0_7 = arith.constant 0 : index
    %5 = vector.load %arg0[%c1, %c0_6, %c0_7] : memref<2x32x16xf32, #tpu.memory_space<vmem>>, vector<1x32x16xf32>
    %6 = vector.shape_cast %5 : vector<1x32x16xf32> to vector<32x16xf32>
    %cst_8 = arith.constant dense<0.000000e+00> : vector<1x16xf32>
    %7 = tpu.matmul %0, %6, %cst_8 {dimension_numbers = #tpu.dot_dimension_numbers<[1], [0], [0], [1], [0, 0, 1, 1], [], []>} : vector<1x32xf32>, vector<32x16xf32>, vector<1x16xf32> -> vector<1x16xf32>
    %8 = tpu.concatenate %4, %7 in 0 : vector<1x16xf32>, vector<1x16xf32> -> vector<2x16xf32>
    %9 = vector.broadcast %1 : f32 to vector<2x16xf32>
    %10 = arith.addf %8, %9 : vector<2x16xf32>
    %11 = arith.negf %10 : vector<2x16xf32>
    %12 = math.exp %11 : vector<2x16xf32>
    %cst_9 = arith.constant 1.000000e+00 : f32
    %13 = vector.broadcast %cst_9 : f32 to vector<2x16xf32>
    %14 = arith.addf %13, %12 : vector<2x16xf32>
    %15 = arith.divf %13, %14 : vector<2x16xf32>
    %c0_10 = arith.constant 0 : index
    %c0_11 = arith.constant 0 : index
    %16 = vector.load %arg3[%c0_10, %c0_11] : memref<2x16xf32, #tpu.memory_space<vmem>>, vector<2x16xf32>
    tpu.vector_store %arg3[%c0_10, %c0_11], %15 {strides = array<i32>} : memref<2x16xf32, #tpu.memory_space<vmem>>, vector<2x16xf32>,
    return
  }
}

</mosaic_0001>

<llo_original>
// kernel: tpu_custom_call.1
$region0: #{tpu_custom_call.1}
  #allocation0 [shape = 'u32[]', space=smem, size = 0x4, offset = 0x4, fixed_abs, tag = 'smem constant byte address 0x4 - core index']
  #allocation1 [shape = 'u32[144,128]{1,0:T(1,128)}', space=vmem, size = 0x12000, scoped, tag = 'internal scratch']
  #allocation2 [shape = 'f32[1,1]{1,0:T(1,128)S(6)}', space=smem, size = 0x200, scoped, tag = 'scoped memory for tpu_custom_call.1']
  %s0 = inlined_call_operand.vmem [shape: f32[2,32,16], index: 0, kind: input, shape index: {}]
  %s1 = inlined_call_operand.vmem [shape: f32[1,32], index: 1, kind: input, shape index: {}]
  %s2 = inlined_call_operand.<no memory space> [shape: f32[1,1], index: 2, kind: input, shape index: {}]
  %s3 = inlined_call_operand.hbm [shape: f32[2,16], index: 3, kind: output, shape index: {}]
  %s4 = sld [smem:[#allocation0]]
  $region22: #{tpu_custom_call.1} parent=0
    _
  %s6 = ssub.s32 1, %s4
  %s7 = scalar_select 0, %s6, %s4
  %8 = sst [smem:[#allocation2]] %s2
  $region1: #{tpu_custom_call.1} parent=0
    #allocation3 [shape = 'u8[1024]{0}', space=vmem, size = 0x400, scoped, tag = 'output window, operand 0, single buffered']
    #allocation4 [shape = 's32[1]{0}', space=sflag, size = 0x4, scoped, tag = 'scoped memory for tpu_custom_call.1']
    %9 = vsyncpa [#allocation4], 0
    // Predicated region
    $region2: #{tpu_custom_call.1} parent=1 // pred_check
      _
    $region3: #{tpu_custom_call.1} parent=1 // pred_check_branch
      %11 = sbr.rel (0) target = $region5
    $region4: #{tpu_custom_call.1} parent=1 // pred_region
      _
    $region5: #{tpu_custom_call.1} parent=1 // pred_fallthru
      _
    // Predicated region
    $region6: #{tpu_custom_call.1} parent=1 // pred_check
      _
    $region7: #{tpu_custom_call.1} parent=1 // pred_check_branch
      %13 = sbr.rel (0) target = $region9
    $region8: #{tpu_custom_call.1} parent=1 // pred_region
      _
    $region9: #{tpu_custom_call.1} parent=1 // pred_fallthru
      _
    // Predicated region
    $region10: #{tpu_custom_call.1} parent=1 // pred_check
      _
    $region11: #{tpu_custom_call.1} parent=1 // pred_check_branch
      %15 = sbr.rel (0) target = $region13
    $region12: #{tpu_custom_call.1} parent=1 // pred_region
      _
    $region13: #{tpu_custom_call.1} parent=1 // pred_fallthru
      _
    %v16 = vld [vmem:[%s1] sm:$0x1]
    %s17 = sld [smem:[#allocation2]]
    %v18 = vld [vmem:[%s0] sm:$0xff]
    %v19 = vld [vmem:[%s0 + $0x8] sm:$0xff]
    %v20 = vld [vmem:[%s0 + $0x10] sm:$0xff]
    %v21 = vld [vmem:[%s0 + $0x18] sm:$0xff]
    %vm22 = vcmask 261120
    %v24 = vsel %vm22, %v16, 0
    %26 = vmatprep.subr.mxu0 0.0
    %27 = vmatpush1.msra.mxu0 0.0
    %28 = vmatprep.subr.mxu0 0.0
    %29 = vmatpush1.msra.mxu0 0.0
    %30 = vmatprep.subr.mxu0 0.0
    %31 = vmatpush1.msra.mxu0 0.0
    %32 = vmatprep.subr.mxu0 0.0
    %33 = vmatpush1.msra.mxu0 0.0
    %34 = vmatprep.subr.mxu0 0.0
    %35 = vmatpush1.msra.mxu0 0.0
    %36 = vmatprep.subr.mxu0 0.0
    %37 = vmatpush1.msra.mxu0 0.0
    %38 = vmatprep.subr.mxu0 0.0
    %39 = vmatpush1.msra.mxu0 0.0
    %40 = vmatprep.subr.mxu0 0.0
    %41 = vmatpush1.msra.mxu0 0.0
    %42 = vmatprep.subr.mxu0 0.0
    %43 = vmatpush1.msra.mxu0 0.0
    %44 = vmatprep.subr.mxu0 0.0
    %45 = vmatpush1.msra.mxu0 0.0
    %46 = vmatprep.subr.mxu0 0.0
    %47 = vmatpush1.msra.mxu0 0.0
    %48 = vmatprep.subr.mxu0 0.0
    %49 = vmatpush1.msra.mxu0 0.0
    %50 = vmatprep.subr.mxu0 0.0
    %51 = vmatpush1.msra.mxu0 %v21
    %52 = vmatprep.subr.mxu0 0.0
    %53 = vmatpush1.msra.mxu0 %v20
    %54 = vmatprep.subr.mxu0 0.0
    %55 = vmatpush1.msra.mxu0 %v19
    %56 = vmatprep.subr.mxu0 0.0
    %57 = vmatpush1.msra.mxu0 %v18
    %58 = vmatprep.subr.mxu0 0.0
    %59 = vmatpush2.msra.mxu0 0.0
    %60 = vmatprep.subr.mxu0 0.0
    %61 = vmatpush2.msra.mxu0 0.0
    %62 = vmatprep.subr.mxu0 0.0
    %63 = vmatpush2.msra.mxu0 0.0
    %64 = vmatprep.subr.mxu0 0.0
    %65 = vmatpush2.msra.mxu0 0.0
    %66 = vmatprep.subr.mxu0 0.0
    %67 = vmatpush2.msra.mxu0 0.0
    %68 = vmatprep.subr.mxu0 0.0
    %69 = vmatpush2.msra.mxu0 0.0
    %70 = vmatprep.subr.mxu0 0.0
    %71 = vmatpush2.msra.mxu0 0.0
    %72 = vmatprep.subr.mxu0 0.0
    %73 = vmatpush2.msra.mxu0 0.0
    %74 = vmatprep.subr.mxu0 0.0
    %75 = vmatpush2.msra.mxu0 0.0
    %76 = vmatprep.subr.mxu0 0.0
    %77 = vmatpush2.msra.mxu0 0.0
    %78 = vmatprep.subr.mxu0 0.0
    %79 = vmatpush2.msra.mxu0 0.0
    %80 = vmatprep.subr.mxu0 0.0
    %81 = vmatpush2.msra.mxu0 0.0
    %82 = vmatprep.subr.mxu0 0.0
    %83 = vmatpush2.msra.mxu0 0.0
    %84 = vmatprep.subr.mxu0 0.0
    %85 = vmatpush2.msra.mxu0 0.0
    %86 = vmatprep.subr.mxu0 0.0
    %87 = vmatpush2.msra.mxu0 0.0
    %88 = vmatprep.subr.mxu0 0.0
    %89 = vmatpush2.msra.mxu0 0.0
    %90 = vmatprep.mubr.f32.mxu0 0.0
    %91 = vmatmul.mubr.f32.gmra.mxu0 %v24
    %v92 = vpop.f32.mrf.mxu0
    %v93 = vadd.f32 0.0, %v92
    %v94 = vpop.f32.mrf.mxu0
    %95 = vdwg.mxu0
    %s96 = scalar_lea.vmem %s0, 32
    %v97 = vld [vmem:[%s96] sm:$0xff]
    %v98 = vld [vmem:[%s96 + $0x8] sm:$0xff]
    %v99 = vld [vmem:[%s96 + $0x10] sm:$0xff]
    %v100 = vld [vmem:[%s96 + $0x18] sm:$0xff]
    %101 = vmatprep.subr.mxu0 0.0
    %102 = vmatpush1.msra.mxu0 0.0
    %103 = vmatprep.subr.mxu0 0.0
    %104 = vmatpush1.msra.mxu0 0.0
    %105 = vmatprep.subr.mxu0 0.0
    %106 = vmatpush1.msra.mxu0 0.0
    %107 = vmatprep.subr.mxu0 0.0
    %108 = vmatpush1.msra.mxu0 0.0
    %109 = vmatprep.subr.mxu0 0.0
    %110 = vmatpush1.msra.mxu0 0.0
    %111 = vmatprep.subr.mxu0 0.0
    %112 = vmatpush1.msra.mxu0 0.0
    %113 = vmatprep.subr.mxu0 0.0
    %114 = vmatpush1.msra.mxu0 0.0
    %115 = vmatprep.subr.mxu0 0.0
    %116 = vmatpush1.msra.mxu0 0.0
    %117 = vmatprep.subr.mxu0 0.0
    %118 = vmatpush1.msra.mxu0 0.0
    %119 = vmatprep.subr.mxu0 0.0
    %120 = vmatpush1.msra.mxu0 0.0
    %121 = vmatprep.subr.mxu0 0.0
    %122 = vmatpush1.msra.mxu0 0.0
    %123 = vmatprep.subr.mxu0 0.0
    %124 = vmatpush1.msra.mxu0 0.0
    %125 = vmatprep.subr.mxu0 0.0
    %126 = vmatpush1.msra.mxu0 %v100
    %127 = vmatprep.subr.mxu0 0.0
    %128 = vmatpush1.msra.mxu0 %v99
    %129 = vmatprep.subr.mxu0 0.0
    %130 = vmatpush1.msra.mxu0 %v98
    %131 = vmatprep.subr.mxu0 0.0
    %132 = vmatpush1.msra.mxu0 %v97
    %133 = vmatprep.subr.mxu0 0.0
    %134 = vmatpush2.msra.mxu0 0.0
    %135 = vmatprep.subr.mxu0 0.0
    %136 = vmatpush2.msra.mxu0 0.0
    %137 = vmatprep.subr.mxu0 0.0
    %138 = vmatpush2.msra.mxu0 0.0
    %139 = vmatprep.subr.mxu0 0.0
    %140 = vmatpush2.msra.mxu0 0.0
    %141 = vmatprep.subr.mxu0 0.0
    %142 = vmatpush2.msra.mxu0 0.0
    %143 = vmatprep.subr.mxu0 0.0
    %144 = vmatpush2.msra.mxu0 0.0
    %145 = vmatprep.subr.mxu0 0.0
    %146 = vmatpush2.msra.mxu0 0.0
    %147 = vmatprep.subr.mxu0 0.0
    %148 = vmatpush2.msra.mxu0 0.0
    %149 = vmatprep.subr.mxu0 0.0
    %150 = vmatpush2.msra.mxu0 0.0
    %151 = vmatprep.subr.mxu0 0.0
    %152 = vmatpush2.msra.mxu0 0.0
    %153 = vmatprep.subr.mxu0 0.0
    %154 = vmatpush2.msra.mxu0 0.0
    %155 = vmatprep.subr.mxu0 0.0
    %156 = vmatpush2.msra.mxu0 0.0
    %157 = vmatprep.subr.mxu0 0.0
    %158 = vmatpush2.msra.mxu0 0.0
    %159 = vmatprep.subr.mxu0 0.0
    %160 = vmatpush2.msra.mxu0 0.0
    %161 = vmatprep.subr.mxu0 0.0
    %162 = vmatpush2.msra.mxu0 0.0
    %163 = vmatprep.subr.mxu0 0.0
    %164 = vmatpush2.msra.mxu0 0.0
    %165 = vmatprep.mubr.f32.mxu0 0.0
    %166 = vmatmul.mubr.f32.gmra.mxu0 %v24
    %v167 = vpop.f32.mrf.mxu0
    %v168 = vadd.f32 0.0, %v167
    %v169 = vpop.f32.mrf.mxu0
    %170 = vdwg.mxu0
    %v172 = vrot.slane %v168, 7
    %vm174 = vcmask 1040384
    %v175 = vsel %vm174, %v93, %v172
    %v176 = vstv %s17
    %v177 = vadd.f32 %v175, %v176
    %v178 = vxor.u32 %v177, 2147483648
    %v179 = vmul.f32 %v178, 1.442695
    %v180 = vpow.pop %v179
    %v181 = vadd.f32 %v180, 1.0
    %v182 = vrcp.pop %v181
    %v183 = vmul.f32 1.0, %v182
    %vm184 = vcmask 123904
    %185 = vst.msk [vmem:[#allocation3] sm:$0x3] %vm184, %v183
    // Predicated region
    $region14: #{tpu_custom_call.1} parent=1 // pred_check
      _
    $region15: #{tpu_custom_call.1} parent=1 // pred_check_branch
      %187 = sbr.rel (0) target = $region17
    $region16: #{tpu_custom_call.1} parent=1 // pred_region
      %s189 = ssub.s32 32, 32
      %190 = vsyncadd [#allocation4], %s189
      %s192 = sshll.u32 [#allocation3], 4
      %s193 = int_to_ptr.vmem [resolvable:$true] %s192
      %195 = dma.vmem_to_hbm [thread:$0]  %s193, 32, %s3, [#allocation4]
    $region17: #{tpu_custom_call.1} parent=1 // pred_fallthru
      _
    // Predicated region
    $region18: #{tpu_custom_call.1} parent=1 // pred_check
      _
    $region19: #{tpu_custom_call.1} parent=1 // pred_check_branch
      %197 = sbr.rel (0) target = $region21
    $region20: #{tpu_custom_call.1} parent=1 // pred_region
      %198 = dma.done [#allocation4], 32
    $region21: #{tpu_custom_call.1} parent=1 // pred_fallthru
      _
    %199 = vsyncpa [#allocation4], 1

</llo_original>
